<compile_context>
chip_gen: v6e
topology: v6e:2x2x1
jax: 0.10.0
libtpu: 0.0.40
codegen_flags: <defaults>
</compile_context>

<pallas_src>
import functools

import jax
import jax.numpy as jnp
from jax.experimental import pallas as pl
from jax.experimental.pallas import tpu as pltpu

LANE = 128             # lane width (last dim)
MAX_BLOCK_ROWS = 8192  # (8192, 128) f32 = 4 MiB per input per pipeline buffer


def _wbce_kernel(o_ref, t_ref, out_ref, *, pos_w: float, neg_w: float,
                 rows: int, block_rows: int, steps_per_slice: int,
                 full_blocks: int, needs_mask: bool):
    j = pl.program_id(1)

    # Zero this slice's resident (1, 8, 128) output accumulator on its first
    # step (the output block index depends only on program_id(0), so it stays
    # in VMEM across the whole "arbitrary" axis).
    @pl.when(j == 0)
    def _():
        out_ref[...] = jnp.zeros_like(out_ref)

    eps = jnp.float32(1e-07)
    one = jnp.float32(1.0)

    # Cast to f32 on load (inputs travel HBM->VMEM in their native dtype).
    o = jnp.clip(o_ref[...].astype(jnp.float32), eps, one - eps)
    t = t_ref[...].astype(jnp.float32)

    log_o = jnp.log(o)            # EUP
    log_1mo = jnp.log(one - o)    # EUP
    # Weights are compile-time Python floats: skip the multiply when == 1.0.
    if pos_w != 1.0:
        log_o = jnp.float32(pos_w) * log_o
    if neg_w != 1.0:
        log_1mo = jnp.float32(neg_w) * log_1mo
    # Un-negated weighted BCE:  w_p*t*log(o) + w_n*(1-t)*log(1-o)
    #                        =  t*(w_p*log(o) - w_n*log(1-o)) + w_n*log(1-o)
    contrib = t * (log_o - log_1mo) + log_1mo

    def accumulate(x):
        # Lane-parallel partial sums (pure VPU vreg adds); the single
        # cross-lane reduce of the (8,128) partials happens in the wrapper.
        out_ref[0] = out_ref[0] + x.reshape(block_rows // 8, 8, LANE).sum(axis=0)

    if needs_mask:
        # Global block index of this step (int32: safe for < 2^31 rows,
        # i.e. < 2^38 elements).
        b = pl.program_id(0) * steps_per_slice + j

        @pl.when(b < full_blocks)
        def _():
            accumulate(contrib)           # hot path: no mask work at all

        @pl.when(b >= full_blocks)
        def _():
            # Ragged / overflow block: drop rows past the valid prefix.
            # Must stay a select (not a multiply-by-mask) so stale-VMEM
            # NaN/Inf garbage is discarded.
            grow = b * block_rows + jax.lax.broadcasted_iota(
                jnp.int32, (block_rows, LANE), 0)
            accumulate(jnp.where(grow < rows, contrib, jnp.float32(0.0)))
    else:
        accumulate(contrib)


def weighted_bce_loss(outputs, targets, pos_weight=None, neg_weight=None,
                      max_block_rows=MAX_BLOCK_ROWS):
    """Mean weighted BCE, matching WeightedBCELoss.forward semantics."""
    pos_w = 1.0 if pos_weight is None else float(pos_weight)
    neg_w = 1.0 if neg_weight is None else float(neg_weight)

    n = int(outputs.size)
    flat_o = outputs.reshape(-1)
    flat_t = targets.reshape(-1)

    rows = n // LANE            # full lanes handled by the kernel
    n_aligned = rows * LANE     # the <128-element tail is handled in jnp

    total = jnp.float32(0.0)

    if rows > 0:
        if n_aligned == n:
            o2 = flat_o.reshape(rows, LANE)
            t2 = flat_t.reshape(rows, LANE)
        else:
            o2 = flat_o[:n_aligned].reshape(rows, LANE)
            t2 = flat_t[:n_aligned].reshape(rows, LANE)

        block_rows = min(max_block_rows, ((rows + 7) // 8) * 8)
        num_blocks = -(-rows // block_rows)
        num_slices = 2 if num_blocks >= 2 else 1       # engages both v7x TCs
        steps_per_slice = -(-num_blocks // num_slices)
        total_blocks = num_slices * steps_per_slice
        full_blocks = rows // block_rows               # blocks with no ragged rows
        needs_mask = (total_blocks * block_rows != rows)

        if total_blocks == num_blocks:
            def tile_map(i, j, _s=steps_per_slice):
                return (i * _s + j, 0)
        else:
            # Clamp overflow blocks of the last slice onto the last real
            # block; their contribution is fully masked off in the kernel.
            def tile_map(i, j, _s=steps_per_slice, _n=num_blocks):
                return (jnp.minimum(i * _s + j, _n - 1), 0)

        tile_spec = pl.BlockSpec((block_rows, LANE), tile_map)

        kernel = functools.partial(
            _wbce_kernel, pos_w=pos_w, neg_w=neg_w, rows=rows,
            block_rows=block_rows, steps_per_slice=steps_per_slice,
            full_blocks=full_blocks, needs_mask=needs_mask)

        # TODO(synk): if an xprof trace still shows exposed input DMA on v7x,
        # add pipeline_mode=pl.Buffered(3) to the two input BlockSpecs.
        partials = pl.pallas_call(
            kernel,
            out_shape=jax.ShapeDtypeStruct((num_slices, 8, LANE), jnp.float32),
            grid_spec=pltpu.PrefetchScalarGridSpec(
                num_scalar_prefetch=0,
                grid=(num_slices, steps_per_slice),
                in_specs=[tile_spec, tile_spec],
                out_specs=pl.BlockSpec((1, 8, LANE), lambda i, j: (i, 0, 0)),
            ),
            compiler_params=pltpu.CompilerParams(
                dimension_semantics=("parallel", "arbitrary"),
                vmem_limit_bytes=32 * 1024 * 1024),
        )(o2, t2)
        total = jnp.sum(partials)

    if n_aligned != n:
        # Tail (< 128 elements): negligible, plain jnp — avoids a full-array
        # jnp.pad copy just to append a few elements.
        eps = jnp.float32(1e-07)
        to = jnp.clip(flat_o[n_aligned:].astype(jnp.float32), eps, 1.0 - eps)
        tt = flat_t[n_aligned:].astype(jnp.float32)
        total = total + jnp.sum(pos_w * tt * jnp.log(to)
                                + neg_w * (1.0 - tt) * jnp.log(1.0 - to))

    # Fold the per-element negation and the mean into one scalar multiply.
    return total * jnp.float32(-1.0 / n)


def _reference(outputs, targets, pos_w=1.0, neg_w=1.0):
    eps = 1e-07
    o = jnp.clip(outputs.astype(jnp.float32), eps, 1.0 - eps)
    t = targets.astype(jnp.float32)
    loss = -(pos_w * t * jnp.log(o) + neg_w * (1.0 - t) * jnp.log(1.0 - o))
    return jnp.mean(loss)


if __name__ == "__main__":
    key = jax.random.PRNGKey(0)
    k1, k2, k3, k4, k5, k6, k7, k8 = jax.random.split(key, 8)

    # --- Primary case: NCHW, lane-aligned, default weights (pos/neg = 1.0) ---
    B, C, H, W = 2, 4, 16, 16
    outputs = jax.nn.sigmoid(jax.random.normal(k1, (B, C, H, W), jnp.float32))
    targets = jax.random.bernoulli(k2, 0.5, (B, C, H, W)).astype(jnp.float32)
    loss = jax.block_until_ready(weighted_bce_loss(outputs, targets))
    ref = _reference(outputs, targets)
    assert jnp.allclose(loss, ref, rtol=1e-5, atol=1e-6), (loss, ref)

    # --- Non-lane-aligned size with soft targets and non-unit weights
    #     (exercises the jnp tail path and the in-kernel weight folding) ---
    o2 = jax.nn.sigmoid(jax.random.normal(k3, (2, 4, 129), jnp.float32))
    t2 = jax.random.uniform(k4, (2, 4, 129), jnp.float32)
    loss2 = jax.block_until_ready(
        weighted_bce_loss(o2, t2, pos_weight=2.0, neg_weight=0.5))
    ref2 = _reference(o2, t2, pos_w=2.0, neg_w=0.5)
    assert jnp.allclose(loss2, ref2, rtol=1e-5, atol=1e-6), (loss2, ref2)

    # --- Multi-block / two-slice / ragged-block path (small block size to
    #     exercise the parallel split, index clamp and masked accumulation) ---
    o3 = jax.nn.sigmoid(jax.random.normal(k5, (2, 4, 16, 20), jnp.float32))
    t3 = jax.random.bernoulli(k6, 0.3, (2, 4, 16, 20)).astype(jnp.float32)
    loss3 = jax.block_until_ready(weighted_bce_loss(o3, t3, max_block_rows=8))
    ref3 = _reference(o3, t3)
    assert jnp.allclose(loss3, ref3, rtol=1e-5, atol=1e-6), (loss3, ref3)

    # --- Tiny input (< one lane): handled entirely by the jnp tail path ---
    o4 = jax.nn.sigmoid(jax.random.normal(k7, (3, 14), jnp.float32))
    t4 = jax.random.bernoulli(k8, 0.5, (3, 14)).astype(jnp.float32)
    loss4 = jax.block_until_ready(weighted_bce_loss(o4, t4))
    ref4 = _reference(o4, t4)
    assert jnp.allclose(loss4, ref4, rtol=1e-5, atol=1e-6), (loss4, ref4)

    print("KERNEL_OK")
</pallas_src>

<mosaic_0001>
module attributes {stable_mosaic.version = 11 : i64} {
  func.func @_wbce_kernel(%arg0: i32, %arg1: i32, %arg2: memref<16x128xf32, #tpu.memory_space<vmem>>, %arg3: memref<16x128xf32, #tpu.memory_space<vmem>>, %arg4: memref<1x8x128xf32, #tpu.memory_space<vmem>>) attributes {dimension_semantics = [#tpu.dimension_semantics<parallel>, #tpu.dimension_semantics<arbitrary>], iteration_bounds = array<i64: 1, 1>, scalar_prefetch = 0 : i64, scratch_operands = 0 : i64, tpu.core_type = #tpu.core_type<tc>, window_params = [{transform_indices = @transform_0, window_bounds = array<i64: 16, 128>}, {transform_indices = @transform_1, window_bounds = array<i64: 16, 128>}, {transform_indices = @transform_2, window_bounds = array<i64: 1, 8, 128>}]} {
    %c0_i32 = arith.constant 0 : i32
    %0 = arith.cmpi eq, %arg1, %c0_i32 : i32
    %1 = arith.extui %0 : i1 to i32
    %c0_i32_0 = arith.constant 0 : i32
    %2 = arith.cmpi ne, %1, %c0_i32_0 : i32
    scf.if %2 {
      %cst_14 = arith.constant 0.000000e+00 : f32
      %25 = vector.broadcast %cst_14 : f32 to vector<1x8x128xf32>
      %c0_15 = arith.constant 0 : index
      %c0_16 = arith.constant 0 : index
      %c0_17 = arith.constant 0 : index
      %26 = vector.load %arg4[%c0_15, %c0_16, %c0_17] : memref<1x8x128xf32, #tpu.memory_space<vmem>>, vector<1x8x128xf32>
      tpu.vector_store %arg4[%c0_15, %c0_16, %c0_17], %25 {strides = array<i32>} : memref<1x8x128xf32, #tpu.memory_space<vmem>>, vector<1x8x128xf32>,
    } else {
    }
    %c0 = arith.constant 0 : index
    %c0_1 = arith.constant 0 : index
    %3 = vector.load %arg2[%c0, %c0_1] : memref<16x128xf32, #tpu.memory_space<vmem>>, vector<16x128xf32>
    %cst = arith.constant 1.000000e+00 : f32
    %cst_2 = arith.constant 1.000000e-07 : f32
    %4 = arith.subf %cst, %cst_2 : f32
    %cst_3 = arith.constant 1.000000e-07 : f32
    %5 = vector.broadcast %cst_3 : f32 to vector<16x128xf32>
    %6 = arith.maximumf %5, %3 : vector<16x128xf32>
    %7 = vector.broadcast %4 : f32 to vector<16x128xf32>
    %8 = arith.minimumf %7, %6 : vector<16x128xf32>
    %c0_4 = arith.constant 0 : index
    %c0_5 = arith.constant 0 : index
    %9 = vector.load %arg3[%c0_4, %c0_5] : memref<16x128xf32, #tpu.memory_space<vmem>>, vector<16x128xf32>
    %10 = math.log %8 : vector<16x128xf32>
    %cst_6 = arith.constant 1.000000e+00 : f32
    %11 = vector.broadcast %cst_6 : f32 to vector<16x128xf32>
    %12 = arith.subf %11, %8 : vector<16x128xf32>
    %13 = math.log %12 : vector<16x128xf32>
    %14 = arith.subf %10, %13 : vector<16x128xf32>
    %15 = arith.mulf %9, %14 : vector<16x128xf32>
    %16 = arith.addf %15, %13 : vector<16x128xf32>
    %c0_7 = arith.constant 0 : index
    %c0_8 = arith.constant 0 : index
    %c0_9 = arith.constant 0 : index
    %17 = vector.load %arg4[%c0_7, %c0_8, %c0_9] : memref<1x8x128xf32, #tpu.memory_space<vmem>>, vector<1x8x128xf32>
    %18 = vector.shape_cast %17 : vector<1x8x128xf32> to vector<8x128xf32>
    %19 = vector.shape_cast %16 : vector<16x128xf32> to vector<2x8x128xf32>
    %cst_10 = arith.constant dense<0.000000e+00> : vector<8x128xf32>
    %20 = vector.multi_reduction <add>, %19, %cst_10 [0] : vector<2x8x128xf32> to vector<8x128xf32>
    %21 = arith.addf %18, %20 : vector<8x128xf32>
    %c0_11 = arith.constant 0 : index
    %c0_12 = arith.constant 0 : index
    %c0_13 = arith.constant 0 : index
    %22 = vector.load %arg4[%c0_11, %c0_12, %c0_13] : memref<1x8x128xf32, #tpu.memory_space<vmem>>, vector<1x8x128xf32>
    %23 = vector.shape_cast %22 : vector<1x8x128xf32> to vector<8x128xf32>
    %24 = vector.shape_cast %21 : vector<8x128xf32> to vector<1x8x128xf32>
    tpu.vector_store %arg4[%c0_11, %c0_12, %c0_13], %24 {strides = array<i32>} : memref<1x8x128xf32, #tpu.memory_space<vmem>>, vector<1x8x128xf32>,
    return
  }
  func.func @transform_0(%arg0: i32, %arg1: i32) -> (i32, i32) {
    %c1_i32 = arith.constant 1 : i32
    %0 = arith.muli %arg0, %c1_i32 : i32
    %1 = arith.addi %0, %arg1 : i32
    %c0_i32 = arith.constant 0 : i32
    %c0_i32_0 = arith.constant 0 : i32
    return %1, %c0_i32 : i32, i32
  }
  func.func @transform_1(%arg0: i32, %arg1: i32) -> (i32, i32) {
    %c1_i32 = arith.constant 1 : i32
    %0 = arith.muli %arg0, %c1_i32 : i32
    %1 = arith.addi %0, %arg1 : i32
    %c0_i32 = arith.constant 0 : i32
    %c0_i32_0 = arith.constant 0 : i32
    return %1, %c0_i32 : i32, i32
  }
  func.func @transform_2(%arg0: i32, %arg1: i32) -> (i32, i32, i32) {
    %c0_i32 = arith.constant 0 : i32
    %c0_i32_0 = arith.constant 0 : i32
    %c0_i32_1 = arith.constant 0 : i32
    return %arg0, %c0_i32, %c0_i32_0 : i32, i32, i32
  }
}

</mosaic_0001>

<llo_original>
// kernel: tpu_custom_call.1
$region0: #{tpu_custom_call.1}
  #allocation0 [shape = 'u32[]', space=smem, size = 0x4, offset = 0x4, fixed_abs, tag = 'smem constant byte address 0x4 - core index']
  #allocation1 [shape = 'u32[144,128]{1,0:T(1,128)}', space=vmem, size = 0x12000, scoped, tag = 'internal scratch']
  %s0 = inlined_call_operand.hbm [shape: f32[16,128], index: 0, kind: input, shape index: {}]
  %s1 = inlined_call_operand.hbm [shape: f32[16,128], index: 1, kind: input, shape index: {}]
  %s2 = inlined_call_operand.hbm [shape: f32[1,8,128], index: 2, kind: output, shape index: {}]
  %s3 = sld [smem:[#allocation0]]
  $region30: #{tpu_custom_call.1} parent=0
    _
  %s5 = ssub.s32 1, %s3
  %s6 = scalar_select 0, %s5, %s3
  $region1: #{tpu_custom_call.1} parent=0
    #allocation2 [shape = 'u8[8192]{0}', space=vmem, size = 0x2000, scoped, tag = 'input window, operand 0, single buffered']
    #allocation3 [shape = 's32[1]{0}', space=sflag, size = 0x4, scoped, tag = 'scoped memory for tpu_custom_call.1']
    #allocation4 [shape = 's32[1]{0}', space=sflag, size = 0x4, scoped, tag = 'scoped memory for tpu_custom_call.1']
    #allocation5 [shape = 'u8[8192]{0}', space=vmem, size = 0x2000, scoped, tag = 'input window, operand 1, single buffered']
    #allocation6 [shape = 's32[1]{0}', space=sflag, size = 0x4, scoped, tag = 'scoped memory for tpu_custom_call.1']
    #allocation7 [shape = 'u8[4096]{0}', space=vmem, size = 0x1000, scoped, tag = 'output window, operand 0, single buffered']
    %7 = vsyncpa [#allocation3], 0
    %8 = vsyncpa [#allocation6], 0
    %9 = vsyncpa [#allocation4], 0
    // Predicated region
    $region2: #{tpu_custom_call.1} parent=1 // pred_check
      _
    $region3: #{tpu_custom_call.1} parent=1 // pred_check_branch
      %11 = sbr.rel (0) target = $region5
    $region4: #{tpu_custom_call.1} parent=1 // pred_region
      %s12 = sadd.s32 0, 0
      %s13 = smul.u32 2, %s12
      %s15 = ssub.s32 256, 256
      %16 = vsyncadd [#allocation3], %s15
      %s17 = smul.addr %s13, 128
      %s18 = scalar_lea.hbm %s0, %s17
      %s19 = sshll.u32 [#allocation2], 4
      %s20 = int_to_ptr.vmem [resolvable:$true] %s19
      %25 = dma.hbm_to_vmem [thread:$0]  %s18, 256, %s20, [#allocation3], 128, 128, 8
    $region5: #{tpu_custom_call.1} parent=1 // pred_fallthru
      _
    // Predicated region
    $region6: #{tpu_custom_call.1} parent=1 // pred_check
      _
    $region7: #{tpu_custom_call.1} parent=1 // pred_check_branch
      %27 = sbr.rel (0) target = $region9
    $region8: #{tpu_custom_call.1} parent=1 // pred_region
      %s28 = sadd.s32 0, 0
      %s29 = smul.u32 2, %s28
      %s31 = ssub.s32 256, 256
      %32 = vsyncadd [#allocation6], %s31
      %s33 = smul.addr %s29, 128
      %s34 = scalar_lea.hbm %s1, %s33
      %s35 = sshll.u32 [#allocation5], 4
      %s36 = int_to_ptr.vmem [resolvable:$true] %s35
      %41 = dma.hbm_to_vmem [thread:$0]  %s34, 256, %s36, [#allocation6], 128, 128, 8
    $region9: #{tpu_custom_call.1} parent=1 // pred_fallthru
      _
    // Predicated region
    $region10: #{tpu_custom_call.1} parent=1 // pred_check
      _
    $region11: #{tpu_custom_call.1} parent=1 // pred_check_branch
      %43 = sbr.rel (0) target = $region13
    $region12: #{tpu_custom_call.1} parent=1 // pred_region
      %44 = dma.done [#allocation3], 256
    $region13: #{tpu_custom_call.1} parent=1 // pred_fallthru
      _
    // Predicated region
    $region14: #{tpu_custom_call.1} parent=1 // pred_check
      _
    $region15: #{tpu_custom_call.1} parent=1 // pred_check_branch
      %46 = sbr.rel (0) target = $region17
    $region16: #{tpu_custom_call.1} parent=1 // pred_region
      %47 = dma.done [#allocation6], 256
    $region17: #{tpu_custom_call.1} parent=1 // pred_fallthru
      _
    %s48 = sadd.s32 0, 0
    %s49 = smul.u32 2, %s48
    %s50 = sadd.s32 0, 0
    %s51 = smul.u32 2, %s50
    %p52 = scmp.eq.s32.totalorder 0, 0
    // Predicated region
    $region18: #{tpu_custom_call.1} parent=1 // pred_check
      %p53 = pneg %p52
    $region19: #{tpu_custom_call.1} parent=1 // pred_check_branch
      %55 = sbr.rel (%p53) target = $region21
    $region20: #{tpu_custom_call.1} parent=1 // pred_region
      %56 = vst [vmem:[#allocation7] sm:$0xff] 0.0
    $region21: #{tpu_custom_call.1} parent=1 // pred_fallthru
      _
    %v57 = vld [vmem:[#allocation2] sm:$0xff]
    %v58 = vld [vmem:[#allocation2 + $0x8] sm:$0xff]
    %v59 = vmax.f32 %v57, 1e-07
    %v60 = vmax.f32 %v58, 1e-07
    %v61 = vmin.f32 %v59, 0.9999999
    %v62 = vmin.f32 %v60, 0.9999999
    %v63 = vld [vmem:[#allocation5] sm:$0xff]
    %v64 = vld [vmem:[#allocation5 + $0x8] sm:$0xff]
    %v65 = vlog2.pop %v61
    %v66 = vmul.f32 %v65, 0.6931472
    %v67 = vlog2.pop %v62
    %v68 = vmul.f32 %v67, 0.6931472
    %v69 = vsub.f32 1.0, %v61
    %v70 = vsub.f32 1.0, %v62
    %v71 = vlog2.pop %v69
    %v72 = vmul.f32 %v71, 0.6931472
    %v73 = vlog2.pop %v70
    %v74 = vmul.f32 %v73, 0.6931472
    %v75 = vsub.f32 %v66, %v72
    %v76 = vsub.f32 %v68, %v74
    %v77 = vmul.f32 %v63, %v75
    %v78 = vmul.f32 %v64, %v76
    %v79 = vadd.f32 %v77, %v72
    %v80 = vadd.f32 %v78, %v74
    %v81 = vld [vmem:[#allocation7] sm:$0xff]
    %v82 = vadd.f32 %v79, %v80
    %v83 = vadd.f32 %v81, %v82
    %84 = vst [vmem:[#allocation7] sm:$0xff] %v83
    // Predicated region
    $region22: #{tpu_custom_call.1} parent=1 // pred_check
      _
    $region23: #{tpu_custom_call.1} parent=1 // pred_check_branch
      %86 = sbr.rel (0) target = $region25
    $region24: #{tpu_custom_call.1} parent=1 // pred_region
      %s88 = ssub.s32 128, 128
      %89 = vsyncadd [#allocation4], %s88
      %s91 = sshll.u32 [#allocation7], 4
      %s92 = int_to_ptr.vmem [resolvable:$true] %s91
      %94 = dma.vmem_to_hbm [thread:$0]  %s92, 128, %s2, [#allocation4]
    $region25: #{tpu_custom_call.1} parent=1 // pred_fallthru
      _
    // Predicated region
    $region26: #{tpu_custom_call.1} parent=1 // pred_check
      _
    $region27: #{tpu_custom_call.1} parent=1 // pred_check_branch
      %96 = sbr.rel (0) target = $region29
    $region28: #{tpu_custom_call.1} parent=1 // pred_region
      %97 = dma.done [#allocation4], 128
    $region29: #{tpu_custom_call.1} parent=1 // pred_fallthru
      _
    %98 = vsyncpa [#allocation3], 1
    %99 = vsyncpa [#allocation6], 1
    %100 = vsyncpa [#allocation4], 1

</llo_original>
